<compile_context>
chip_gen: v5e
topology: v5e:2x2
jax: 0.10.0
libtpu: 0.0.40
codegen_flags: <defaults>
</compile_context>

<pallas_src>
import functools

import jax
import jax.numpy as jnp
from jax.experimental import pallas as pl
from jax.experimental.pallas import tpu as pltpu

SMOOTH_NR = 1e-5   # MONAI DiceLoss defaults
SMOOTH_DR = 1e-5

_R_TILE_CAP = 512  # 512 sublane-rows * 128 lanes = 65536 pixels per S tile


def _dice_ce_kernel(data_ref, lab_ref, w_ref, b_ref, acc_ref, *,
                    total_rows, has_tail):
    s = pl.program_id(1)
    cout, cin = w_ref.shape
    n_fg = cout - 1
    ce_idx = 3 * n_fg
    r_tile = lab_ref.shape[1]

    @pl.when(s == 0)
    def _():
        acc_ref[...] = jnp.zeros_like(acc_ref)

    # Load each input channel once (dense (r_tile, 128) tiles); compute in f32.
    xs = [data_ref[0, ci].astype(jnp.float32) for ci in range(cin)]
    lab = lab_ref[0].astype(jnp.int32)          # int8 in HBM, widened on VPU

    # Row-validity mask for the last (partial) S tile; gates *all* partial
    # sums including pred_o so padded/OOB pixels never reach Dice/CE.
    if has_tail:
        rows_left = total_rows - s * r_tile
        row_idx = jax.lax.broadcasted_iota(jnp.int32, (r_tile, 128), 0)
        valid = row_idx < rows_left
    else:
        valid = None

    # 1x1-conv head, class axis unrolled on the VPU (the MXU would waste >99%
    # of its systolic array on a Cout x Cin = 3x4 contraction).
    logits = []
    for c in range(cout):
        l = xs[0] * w_ref[c, 0] + b_ref[c]
        for ci in range(1, cin):
            l = l + xs[ci] * w_ref[c, ci]
        logits.append(l)

    # Softmax / log-softmax scaffolding over the unrolled class axis: pure
    # elementwise VALU + EUP work, no cross-sublane XLU reductions.
    m = logits[0]
    for c in range(1, cout):
        m = jnp.maximum(m, logits[c])
    shifted = [l - m for l in logits]
    exps = [jnp.exp(sh) for sh in shifted]
    denom = exps[0]
    for c in range(1, cout):
        denom = denom + exps[c]
    inv = pl.reciprocal(denom, approx=False)     # exact, keeps 1e-4 tolerance
    log_denom = jnp.log(denom)

    def fold(x):
        # Sum (r_tile, 128) down to one (8, 128) vreg tile using aligned
        # static 8-row slices: pure VALU adds, no XLU, no big RMW traffic.
        out = x[0:8]
        for i in range(8, r_tile, 8):
            out = out + x[i:i + 8]
        return out

    zero = jnp.float32(0.0)
    one = jnp.float32(1.0)

    # Fused per-class consumption: form and immediately fold each class's
    # intersect / pred / ground / nll contributions (where-selects, no
    # materialized one-hot masks).
    nll = None
    for c in range(cout):
        is_c = lab == c
        if valid is not None:
            is_c = jnp.logical_and(is_c, valid)
        prob_c = exps[c] * inv
        logp_c = shifted[c] - log_denom
        term = jnp.where(is_c, logp_c, zero)
        nll = term if nll is None else nll + term
        if c >= 1:                               # include_background=False
            j = c - 1
            pc = jnp.where(valid, prob_c, zero) if valid is not None else prob_c
            acc_ref[0, 3 * j] = acc_ref[0, 3 * j] + fold(
                jnp.where(is_c, prob_c, zero))                   # intersect
            acc_ref[0, 3 * j + 1] = acc_ref[0, 3 * j + 1] + fold(pc)   # pred_o
            acc_ref[0, 3 * j + 2] = acc_ref[0, 3 * j + 2] + fold(
                jnp.where(is_c, one, zero))                      # ground_o
    acc_ref[0, ce_idx] = acc_ref[0, ce_idx] - fold(nll)          # CE partial


def seg_dice_ce_loss(data_nchw, labels_nchw, w, bias):
    """Fused 1x1-conv model + DiceCELoss. Returns a scalar f32 loss."""
    B, Cin, H, W = data_nchw.shape
    Cout = w.shape[0]
    S = H * W
    assert S % 128 == 0, "spatial size H*W must be a multiple of 128"
    R = S // 128

    # Tile choice: big lane-dense tiles; 32-row multiples satisfy f32/bf16/int8
    # (8/16/32, 128) layout rules without relying on full-extent exemptions.
    if R > _R_TILE_CAP:
        r_tile = _R_TILE_CAP
    else:
        r_tile = ((R + 31) // 32) * 32
    n_s = -(-R // r_tile)
    has_tail = (n_s * r_tile != R)
    n_acc = 3 * (Cout - 1) + 1      # per-fg-class intersect/pred/ground + CE

    # Keep bf16 activations bf16 on the wire (half the dominant HBM stream);
    # labels go as int8 (NUM_CLASSES < 128). Compute is f32 in-kernel.
    data_dt = (data_nchw.dtype
               if data_nchw.dtype in (jnp.dtype(jnp.bfloat16), jnp.dtype(jnp.float32))
               else jnp.dtype(jnp.float32))
    data = data_nchw.reshape(B, Cin, R, 128).astype(data_dt)
    labels = labels_nchw.reshape(B, R, 128).astype(jnp.int8)

    # If the whole spatial extent is smaller than one tile, zero-pad the row
    # axis so the block never exceeds the array (padded rows are masked out
    # in-kernel). Large R uses cdiv tiling with OOB-padded last block instead.
    r_arr = max(R, r_tile)
    if r_arr != R:
        data = jnp.pad(data, ((0, 0), (0, 0), (0, r_arr - R), (0, 0)))
        labels = jnp.pad(labels, ((0, 0), (0, r_arr - R), (0, 0)))

    w2 = w.astype(jnp.float32)
    b2 = bias.reshape(Cout).astype(jnp.float32)

    # VMEM budget: double-buffered input tiles + output accumulator + live
    # f32 tile temporaries; capped well under v7x's 64 MiB physical VMEM.
    data_blk = Cin * r_tile * 128 * jnp.dtype(data_dt).itemsize
    lab_blk = r_tile * 128 * 1
    acc_blk = n_acc * 8 * 128 * 4
    temp_bytes = 12 * r_tile * 128 * 4
    needed = 2 * (data_blk + lab_blk + acc_blk) + temp_bytes + (2 << 20)
    vmem_limit = int(min(max(2 * needed, 16 << 20), 48 << 20))

    kernel = functools.partial(_dice_ce_kernel, total_rows=R, has_tail=has_tail)

    acc_out = pl.pallas_call(
        kernel,
        out_shape=jax.ShapeDtypeStruct((B, n_acc, 8, 128), jnp.float32),
        grid_spec=pltpu.PrefetchScalarGridSpec(
            num_scalar_prefetch=0,
            grid=(B, n_s),
            in_specs=[
                pl.BlockSpec((1, Cin, r_tile, 128),
                             lambda b, s: (b, 0, s, 0)),            # data tile
                pl.BlockSpec((1, r_tile, 128),
                             lambda b, s: (b, s, 0)),               # label tile
                pl.BlockSpec(memory_space=pltpu.MemorySpace.SMEM),  # conv weight
                pl.BlockSpec(memory_space=pltpu.MemorySpace.SMEM),  # conv bias
            ],
            out_specs=pl.BlockSpec((1, n_acc, 8, 128),
                                   lambda b, s: (b, 0, 0, 0)),      # accumulators
        ),
        compiler_params=pltpu.CompilerParams(
            dimension_semantics=("parallel", "arbitrary"),
            vmem_limit_bytes=vmem_limit),
    )(data, labels, w2, b2)

    # Finalize in plain JAX: one tiny (B, n_acc, 8, 128) reduce + Dice/CE math.
    sums = jnp.sum(acc_out, axis=(2, 3))                  # (B, n_acc)
    n_fg = Cout - 1
    inter = sums[:, 0:3 * n_fg:3]
    pred = sums[:, 1:3 * n_fg:3]
    grnd = sums[:, 2:3 * n_fg:3]
    dice = 1.0 - (2.0 * inter + SMOOTH_NR) / (pred + grnd + SMOOTH_DR)
    ce = jnp.sum(sums[:, -1]) / (B * S)
    return jnp.mean(dice) + ce


def _ref_loss(data_nchw, labels_nchw, w, bias):
    """Pure-JAX reference with identical math (MONAI DiceCELoss semantics)."""
    B, Cin, H, W = data_nchw.shape
    Cout = w.shape[0]
    S = H * W
    x = data_nchw.reshape(B, Cin, S).astype(jnp.float32)
    logits = jnp.einsum('oc,bcs->bos', w, x) + bias[None, :, None]
    p = jax.nn.softmax(logits, axis=1)
    logp = jax.nn.log_softmax(logits, axis=1)
    lab = labels_nchw.reshape(B, S)
    onehot = jax.nn.one_hot(lab, Cout, axis=1, dtype=jnp.float32)  # (B, Cout, S)
    ce = -jnp.mean(jnp.sum(onehot * logp, axis=1))
    inter = jnp.sum(p * onehot, axis=2)
    den = jnp.sum(p, axis=2) + jnp.sum(onehot, axis=2)
    dice = 1.0 - (2.0 * inter + SMOOTH_NR) / (den + SMOOTH_DR)
    return jnp.mean(dice[:, 1:]) + ce


if __name__ == "__main__":
    B, Cin, H, W = 2, 4, 16, 16
    NUM_CLASSES = 3

    key = jax.random.PRNGKey(0)
    k_data, k_lab, k_w, k_b = jax.random.split(key, 4)

    data = jax.random.normal(k_data, (B, Cin, H, W), jnp.float32)
    labels = jax.random.randint(k_lab, (B, 1, H, W), 0, NUM_CLASSES, dtype=jnp.int32)
    targets = (data, labels)   # mimics `targets[1]` usage in the torch module

    # Deterministic "model" parameters (1x1 conv head).
    w = 0.1 * jax.random.normal(k_w, (NUM_CLASSES, Cin), jnp.float32)
    bias = 0.1 * jax.random.normal(k_b, (NUM_CLASSES,), jnp.float32)

    loss = seg_dice_ce_loss(data, targets[1], w, bias)
    loss = jax.block_until_ready(loss)

    ref = _ref_loss(data, targets[1], w, bias)
    assert abs(float(loss) - float(ref)) < 1e-4, (float(loss), float(ref))

    print("KERNEL_OK")
</pallas_src>

<mosaic_0001>
module attributes {stable_mosaic.version = 11 : i64} {
  func.func @_dice_ce_kernel(%arg0: i32, %arg1: i32, %arg2: memref<1x4x32x128xf32, #tpu.memory_space<vmem>>, %arg3: memref<1x32x128xi8, #tpu.memory_space<vmem>>, %arg4: memref<3x4xf32, #tpu.memory_space<smem>>, %arg5: memref<3xf32, #tpu.memory_space<smem>>, %arg6: memref<1x7x8x128xf32, #tpu.memory_space<vmem>>) attributes {dimension_semantics = [#tpu.dimension_semantics<parallel>, #tpu.dimension_semantics<arbitrary>], iteration_bounds = array<i64: 2, 1>, scalar_prefetch = 0 : i64, scratch_operands = 0 : i64, tpu.core_type = #tpu.core_type<tc>, window_params = [{transform_indices = @transform_0, window_bounds = array<i64: 1, 4, 32, 128>}, {transform_indices = @transform_1, window_bounds = array<i64: 1, 32, 128>}, {transform_indices = @transform_2, window_bounds = array<i64: 3, 4>}, {transform_indices = @transform_3, window_bounds = array<i64: 3>}, {transform_indices = @transform_4, window_bounds = array<i64: 1, 7, 8, 128>}]} {
    %c0_i32 = arith.constant 0 : i32
    %0 = arith.cmpi eq, %arg1, %c0_i32 : i32
    %1 = arith.extui %0 : i1 to i32
    %c0_i32_0 = arith.constant 0 : i32
    %2 = arith.cmpi ne, %1, %c0_i32_0 : i32
    scf.if %2 {
      %cst_108 = arith.constant 0.000000e+00 : f32
      %212 = vector.broadcast %cst_108 : f32 to vector<1x7x8x128xf32>
      %c0_109 = arith.constant 0 : index
      %c0_110 = arith.constant 0 : index
      %c0_111 = arith.constant 0 : index
      %c0_112 = arith.constant 0 : index
      %213 = vector.load %arg6[%c0_109, %c0_110, %c0_111, %c0_112] : memref<1x7x8x128xf32, #tpu.memory_space<vmem>>, vector<1x7x8x128xf32>
      tpu.vector_store %arg6[%c0_109, %c0_110, %c0_111, %c0_112], %212 {strides = array<i32>} : memref<1x7x8x128xf32, #tpu.memory_space<vmem>>, vector<1x7x8x128xf32>,
    } else {
    }
    %c0 = arith.constant 0 : index
    %c0_1 = arith.constant 0 : index
    %c0_2 = arith.constant 0 : index
    %c0_3 = arith.constant 0 : index
    %3 = vector.load %arg2[%c0, %c0_1, %c0_2, %c0_3] : memref<1x4x32x128xf32, #tpu.memory_space<vmem>>, vector<1x1x32x128xf32>
    %4 = vector.shape_cast %3 : vector<1x1x32x128xf32> to vector<32x128xf32>
    %c0_4 = arith.constant 0 : index
    %c1 = arith.constant 1 : index
    %c0_5 = arith.constant 0 : index
    %c0_6 = arith.constant 0 : index
    %5 = vector.load %arg2[%c0_4, %c1, %c0_5, %c0_6] : memref<1x4x32x128xf32, #tpu.memory_space<vmem>>, vector<1x1x32x128xf32>
    %6 = vector.shape_cast %5 : vector<1x1x32x128xf32> to vector<32x128xf32>
    %c0_7 = arith.constant 0 : index
    %c2 = arith.constant 2 : index
    %c0_8 = arith.constant 0 : index
    %c0_9 = arith.constant 0 : index
    %7 = vector.load %arg2[%c0_7, %c2, %c0_8, %c0_9] : memref<1x4x32x128xf32, #tpu.memory_space<vmem>>, vector<1x1x32x128xf32>
    %8 = vector.shape_cast %7 : vector<1x1x32x128xf32> to vector<32x128xf32>
    %c0_10 = arith.constant 0 : index
    %c3 = arith.constant 3 : index
    %c0_11 = arith.constant 0 : index
    %c0_12 = arith.constant 0 : index
    %9 = vector.load %arg2[%c0_10, %c3, %c0_11, %c0_12] : memref<1x4x32x128xf32, #tpu.memory_space<vmem>>, vector<1x1x32x128xf32>
    %10 = vector.shape_cast %9 : vector<1x1x32x128xf32> to vector<32x128xf32>
    %c0_13 = arith.constant 0 : index
    %c0_14 = arith.constant 0 : index
    %c0_15 = arith.constant 0 : index
    %11 = vector.load %arg3[%c0_13, %c0_14, %c0_15] : memref<1x32x128xi8, #tpu.memory_space<vmem>>, vector<1x32x128xi8>
    %12 = vector.shape_cast %11 : vector<1x32x128xi8> to vector<32x128xi8>
    %13 = arith.extsi %12 : vector<32x128xi8> to vector<32x128xi32>
    %c32_i32 = arith.constant 32 : i32
    %14 = arith.muli %arg1, %c32_i32 : i32
    %c2_i32 = arith.constant 2 : i32
    %15 = arith.subi %c2_i32, %14 : i32
    %16 = tpu.iota {dimensions = array<i32: 0>} : vector<32x128xi32>
    %17 = vector.broadcast %15 : i32 to vector<32x128xi32>
    %18 = arith.cmpi slt, %16, %17 : vector<32x128xi32>
    %c0_16 = arith.constant 0 : index
    %c0_17 = arith.constant 0 : index
    %19 = memref.load %arg4[%c0_16, %c0_17] : memref<3x4xf32, #tpu.memory_space<smem>>
    %20 = vector.broadcast %19 : f32 to vector<32x128xf32>
    %21 = arith.mulf %4, %20 : vector<32x128xf32>
    %c0_18 = arith.constant 0 : index
    %22 = memref.load %arg5[%c0_18] : memref<3xf32, #tpu.memory_space<smem>>
    %23 = vector.broadcast %22 : f32 to vector<32x128xf32>
    %24 = arith.addf %21, %23 : vector<32x128xf32>
    %c0_19 = arith.constant 0 : index
    %c1_20 = arith.constant 1 : index
    %25 = memref.load %arg4[%c0_19, %c1_20] : memref<3x4xf32, #tpu.memory_space<smem>>
    %26 = vector.broadcast %25 : f32 to vector<32x128xf32>
    %27 = arith.mulf %6, %26 : vector<32x128xf32>
    %28 = arith.addf %24, %27 : vector<32x128xf32>
    %c0_21 = arith.constant 0 : index
    %c2_22 = arith.constant 2 : index
    %29 = memref.load %arg4[%c0_21, %c2_22] : memref<3x4xf32, #tpu.memory_space<smem>>
    %30 = vector.broadcast %29 : f32 to vector<32x128xf32>
    %31 = arith.mulf %8, %30 : vector<32x128xf32>
    %32 = arith.addf %28, %31 : vector<32x128xf32>
    %c0_23 = arith.constant 0 : index
    %c3_24 = arith.constant 3 : index
    %33 = memref.load %arg4[%c0_23, %c3_24] : memref<3x4xf32, #tpu.memory_space<smem>>
    %34 = vector.broadcast %33 : f32 to vector<32x128xf32>
    %35 = arith.mulf %10, %34 : vector<32x128xf32>
    %36 = arith.addf %32, %35 : vector<32x128xf32>
    %c1_25 = arith.constant 1 : index
    %c0_26 = arith.constant 0 : index
    %37 = memref.load %arg4[%c1_25, %c0_26] : memref<3x4xf32, #tpu.memory_space<smem>>
    %38 = vector.broadcast %37 : f32 to vector<32x128xf32>
    %39 = arith.mulf %4, %38 : vector<32x128xf32>
    %c1_27 = arith.constant 1 : index
    %40 = memref.load %arg5[%c1_27] : memref<3xf32, #tpu.memory_space<smem>>
    %41 = vector.broadcast %40 : f32 to vector<32x128xf32>
    %42 = arith.addf %39, %41 : vector<32x128xf32>
    %c1_28 = arith.constant 1 : index
    %c1_29 = arith.constant 1 : index
    %43 = memref.load %arg4[%c1_28, %c1_29] : memref<3x4xf32, #tpu.memory_space<smem>>
    %44 = vector.broadcast %43 : f32 to vector<32x128xf32>
    %45 = arith.mulf %6, %44 : vector<32x128xf32>
    %46 = arith.addf %42, %45 : vector<32x128xf32>
    %c1_30 = arith.constant 1 : index
    %c2_31 = arith.constant 2 : index
    %47 = memref.load %arg4[%c1_30, %c2_31] : memref<3x4xf32, #tpu.memory_space<smem>>
    %48 = vector.broadcast %47 : f32 to vector<32x128xf32>
    %49 = arith.mulf %8, %48 : vector<32x128xf32>
    %50 = arith.addf %46, %49 : vector<32x128xf32>
    %c1_32 = arith.constant 1 : index
    %c3_33 = arith.constant 3 : index
    %51 = memref.load %arg4[%c1_32, %c3_33] : memref<3x4xf32, #tpu.memory_space<smem>>
    %52 = vector.broadcast %51 : f32 to vector<32x128xf32>
    %53 = arith.mulf %10, %52 : vector<32x128xf32>
    %54 = arith.addf %50, %53 : vector<32x128xf32>
    %c2_34 = arith.constant 2 : index
    %c0_35 = arith.constant 0 : index
    %55 = memref.load %arg4[%c2_34, %c0_35] : memref<3x4xf32, #tpu.memory_space<smem>>
    %56 = vector.broadcast %55 : f32 to vector<32x128xf32>
    %57 = arith.mulf %4, %56 : vector<32x128xf32>
    %c2_36 = arith.constant 2 : index
    %58 = memref.load %arg5[%c2_36] : memref<3xf32, #tpu.memory_space<smem>>
    %59 = vector.broadcast %58 : f32 to vector<32x128xf32>
    %60 = arith.addf %57, %59 : vector<32x128xf32>
    %c2_37 = arith.constant 2 : index
    %c1_38 = arith.constant 1 : index
    %61 = memref.load %arg4[%c2_37, %c1_38] : memref<3x4xf32, #tpu.memory_space<smem>>
    %62 = vector.broadcast %61 : f32 to vector<32x128xf32>
    %63 = arith.mulf %6, %62 : vector<32x128xf32>
    %64 = arith.addf %60, %63 : vector<32x128xf32>
    %c2_39 = arith.constant 2 : index
    %c2_40 = arith.constant 2 : index
    %65 = memref.load %arg4[%c2_39, %c2_40] : memref<3x4xf32, #tpu.memory_space<smem>>
    %66 = vector.broadcast %65 : f32 to vector<32x128xf32>
    %67 = arith.mulf %8, %66 : vector<32x128xf32>
    %68 = arith.addf %64, %67 : vector<32x128xf32>
    %c2_41 = arith.constant 2 : index
    %c3_42 = arith.constant 3 : index
    %69 = memref.load %arg4[%c2_41, %c3_42] : memref<3x4xf32, #tpu.memory_space<smem>>
    %70 = vector.broadcast %69 : f32 to vector<32x128xf32>
    %71 = arith.mulf %10, %70 : vector<32x128xf32>
    %72 = arith.addf %68, %71 : vector<32x128xf32>
    %73 = arith.maximumf %36, %54 : vector<32x128xf32>
    %74 = arith.maximumf %73, %72 : vector<32x128xf32>
    %75 = arith.subf %36, %74 : vector<32x128xf32>
    %76 = arith.subf %54, %74 : vector<32x128xf32>
    %77 = arith.subf %72, %74 : vector<32x128xf32>
    %78 = math.exp %75 : vector<32x128xf32>
    %79 = math.exp %76 : vector<32x128xf32>
    %80 = math.exp %77 : vector<32x128xf32>
    %81 = arith.addf %78, %79 : vector<32x128xf32>
    %82 = arith.addf %81, %80 : vector<32x128xf32>
    %83 = tpu.reciprocal %82 : vector<32x128xf32> -> vector<32x128xf32>
    %84 = math.log %82 : vector<32x128xf32>
    %c0_i32_43 = arith.constant 0 : i32
    %85 = vector.broadcast %c0_i32_43 : i32 to vector<32x128xi32>
    %86 = arith.cmpi eq, %13, %85 : vector<32x128xi32>
    %87 = arith.andi %86, %18 : vector<32x128xi1>
    %88 = arith.subf %75, %84 : vector<32x128xf32>
    %cst = arith.constant 0.000000e+00 : f32
    %89 = vector.broadcast %cst : f32 to vector<32x128xf32>
    %90 = arith.select %87, %88, %89 : vector<32x128xi1>, vector<32x128xf32>
    %c1_i32 = arith.constant 1 : i32
    %91 = vector.broadcast %c1_i32 : i32 to vector<32x128xi32>
    %92 = arith.cmpi eq, %13, %91 : vector<32x128xi32>
    %93 = arith.andi %92, %18 : vector<32x128xi1>
    %94 = arith.mulf %79, %83 : vector<32x128xf32>
    %95 = arith.subf %76, %84 : vector<32x128xf32>
    %cst_44 = arith.constant 0.000000e+00 : f32
    %96 = vector.broadcast %cst_44 : f32 to vector<32x128xf32>
    %97 = arith.select %93, %95, %96 : vector<32x128xi1>, vector<32x128xf32>
    %98 = arith.addf %90, %97 : vector<32x128xf32>
    %cst_45 = arith.constant 0.000000e+00 : f32
    %99 = vector.broadcast %cst_45 : f32 to vector<32x128xf32>
    %100 = arith.select %18, %94, %99 : vector<32x128xi1>, vector<32x128xf32>
    %c0_46 = arith.constant 0 : index
    %c0_47 = arith.constant 0 : index
    %c0_48 = arith.constant 0 : index
    %c0_49 = arith.constant 0 : index
    %101 = vector.load %arg6[%c0_46, %c0_47, %c0_48, %c0_49] : memref<1x7x8x128xf32, #tpu.memory_space<vmem>>, vector<1x1x8x128xf32>
    %102 = vector.shape_cast %101 : vector<1x1x8x128xf32> to vector<8x128xf32>
    %cst_50 = arith.constant 0.000000e+00 : f32
    %103 = vector.broadcast %cst_50 : f32 to vector<32x128xf32>
    %104 = arith.select %93, %94, %103 : vector<32x128xi1>, vector<32x128xf32>
    %105 = vector.extract_strided_slice %104 {offsets = [0, 0], sizes = [8, 128], strides = [1, 1]} : vector<32x128xf32> to vector<8x128xf32>
    %106 = vector.extract_strided_slice %104 {offsets = [8, 0], sizes = [8, 128], strides = [1, 1]} : vector<32x128xf32> to vector<8x128xf32>
    %107 = arith.addf %105, %106 : vector<8x128xf32>
    %108 = vector.extract_strided_slice %104 {offsets = [16, 0], sizes = [8, 128], strides = [1, 1]} : vector<32x128xf32> to vector<8x128xf32>
    %109 = arith.addf %107, %108 : vector<8x128xf32>
    %110 = vector.extract_strided_slice %104 {offsets = [24, 0], sizes = [8, 128], strides = [1, 1]} : vector<32x128xf32> to vector<8x128xf32>
    %111 = arith.addf %109, %110 : vector<8x128xf32>
    %112 = arith.addf %102, %111 : vector<8x128xf32>
    %c0_51 = arith.constant 0 : index
    %c0_52 = arith.constant 0 : index
    %c0_53 = arith.constant 0 : index
    %c0_54 = arith.constant 0 : index
    %113 = vector.load %arg6[%c0_51, %c0_52, %c0_53, %c0_54] : memref<1x7x8x128xf32, #tpu.memory_space<vmem>>, vector<1x1x8x128xf32>
    %114 = vector.shape_cast %113 : vector<1x1x8x128xf32> to vector<8x128xf32>
    %115 = vector.shape_cast %112 : vector<8x128xf32> to vector<1x1x8x128xf32>
    tpu.vector_store %arg6[%c0_51, %c0_52, %c0_53, %c0_54], %115 {strides = array<i32>} : memref<1x7x8x128xf32, #tpu.memory_space<vmem>>, vector<1x1x8x128xf32>,
    %c0_55 = arith.constant 0 : index
    %c1_56 = arith.constant 1 : index
    %c0_57 = arith.constant 0 : index
    %c0_58 = arith.constant 0 : index
    %116 = vector.load %arg6[%c0_55, %c1_56, %c0_57, %c0_58] : memref<1x7x8x128xf32, #tpu.memory_space<vmem>>, vector<1x1x8x128xf32>
    %117 = vector.shape_cast %116 : vector<1x1x8x128xf32> to vector<8x128xf32>
    %118 = vector.extract_strided_slice %100 {offsets = [0, 0], sizes = [8, 128], strides = [1, 1]} : vector<32x128xf32> to vector<8x128xf32>
    %119 = vector.extract_strided_slice %100 {offsets = [8, 0], sizes = [8, 128], strides = [1, 1]} : vector<32x128xf32> to vector<8x128xf32>
    %120 = arith.addf %118, %119 : vector<8x128xf32>
    %121 = vector.extract_strided_slice %100 {offsets = [16, 0], sizes = [8, 128], strides = [1, 1]} : vector<32x128xf32> to vector<8x128xf32>
    %122 = arith.addf %120, %121 : vector<8x128xf32>
    %123 = vector.extract_strided_slice %100 {offsets = [24, 0], sizes = [8, 128], strides = [1, 1]} : vector<32x128xf32> to vector<8x128xf32>
    %124 = arith.addf %122, %123 : vector<8x128xf32>
    %125 = arith.addf %117, %124 : vector<8x128xf32>
    %c0_59 = arith.constant 0 : index
    %c1_60 = arith.constant 1 : index
    %c0_61 = arith.constant 0 : index
    %c0_62 = arith.constant 0 : index
    %126 = vector.load %arg6[%c0_59, %c1_60, %c0_61, %c0_62] : memref<1x7x8x128xf32, #tpu.memory_space<vmem>>, vector<1x1x8x128xf32>
    %127 = vector.shape_cast %126 : vector<1x1x8x128xf32> to vector<8x128xf32>
    %128 = vector.shape_cast %125 : vector<8x128xf32> to vector<1x1x8x128xf32>
    tpu.vector_store %arg6[%c0_59, %c1_60, %c0_61, %c0_62], %128 {strides = array<i32>} : memref<1x7x8x128xf32, #tpu.memory_space<vmem>>, vector<1x1x8x128xf32>,
    %c0_63 = arith.constant 0 : index
    %c2_64 = arith.constant 2 : index
    %c0_65 = arith.constant 0 : index
    %c0_66 = arith.constant 0 : index
    %129 = vector.load %arg6[%c0_63, %c2_64, %c0_65, %c0_66] : memref<1x7x8x128xf32, #tpu.memory_space<vmem>>, vector<1x1x8x128xf32>
    %130 = vector.shape_cast %129 : vector<1x1x8x128xf32> to vector<8x128xf32>
    %cst_67 = arith.constant 1.000000e+00 : f32
    %cst_68 = arith.constant 0.000000e+00 : f32
    %131 = vector.broadcast %cst_67 : f32 to vector<32x128xf32>
    %132 = vector.broadcast %cst_68 : f32 to vector<32x128xf32>
    %133 = arith.select %93, %131, %132 : vector<32x128xi1>, vector<32x128xf32>
    %134 = vector.extract_strided_slice %133 {offsets = [0, 0], sizes = [8, 128], strides = [1, 1]} : vector<32x128xf32> to vector<8x128xf32>
    %135 = vector.extract_strided_slice %133 {offsets = [8, 0], sizes = [8, 128], strides = [1, 1]} : vector<32x128xf32> to vector<8x128xf32>
    %136 = arith.addf %134, %135 : vector<8x128xf32>
    %137 = vector.extract_strided_slice %133 {offsets = [16, 0], sizes = [8, 128], strides = [1, 1]} : vector<32x128xf32> to vector<8x128xf32>
    %138 = arith.addf %136, %137 : vector<8x128xf32>
    %139 = vector.extract_strided_slice %133 {offsets = [24, 0], sizes = [8, 128], strides = [1, 1]} : vector<32x128xf32> to vector<8x128xf32>
    %140 = arith.addf %138, %139 : vector<8x128xf32>
    %141 = arith.addf %130, %140 : vector<8x128xf32>
    %c0_69 = arith.constant 0 : index
    %c2_70 = arith.constant 2 : index
    %c0_71 = arith.constant 0 : index
    %c0_72 = arith.constant 0 : index
    %142 = vector.load %arg6[%c0_69, %c2_70, %c0_71, %c0_72] : memref<1x7x8x128xf32, #tpu.memory_space<vmem>>, vector<1x1x8x128xf32>
    %143 = vector.shape_cast %142 : vector<1x1x8x128xf32> to vector<8x128xf32>
    %144 = vector.shape_cast %141 : vector<8x128xf32> to vector<1x1x8x128xf32>
    tpu.vector_store %arg6[%c0_69, %c2_70, %c0_71, %c0_72], %144 {strides = array<i32>} : memref<1x7x8x128xf32, #tpu.memory_space<vmem>>, vector<1x1x8x128xf32>,
    %c2_i32_73 = arith.constant 2 : i32
    %145 = vector.broadcast %c2_i32_73 : i32 to vector<32x128xi32>
    %146 = arith.cmpi eq, %13, %145 : vector<32x128xi32>
    %147 = arith.andi %146, %18 : vector<32x128xi1>
    %148 = arith.mulf %80, %83 : vector<32x128xf32>
    %149 = arith.subf %77, %84 : vector<32x128xf32>
    %cst_74 = arith.constant 0.000000e+00 : f32
    %150 = vector.broadcast %cst_74 : f32 to vector<32x128xf32>
    %151 = arith.select %147, %149, %150 : vector<32x128xi1>, vector<32x128xf32>
    %152 = arith.addf %98, %151 : vector<32x128xf32>
    %cst_75 = arith.constant 0.000000e+00 : f32
    %153 = vector.broadcast %cst_75 : f32 to vector<32x128xf32>
    %154 = arith.select %18, %148, %153 : vector<32x128xi1>, vector<32x128xf32>
    %c0_76 = arith.constant 0 : index
    %c3_77 = arith.constant 3 : index
    %c0_78 = arith.constant 0 : index
    %c0_79 = arith.constant 0 : index
    %155 = vector.load %arg6[%c0_76, %c3_77, %c0_78, %c0_79] : memref<1x7x8x128xf32, #tpu.memory_space<vmem>>, vector<1x1x8x128xf32>
    %156 = vector.shape_cast %155 : vector<1x1x8x128xf32> to vector<8x128xf32>
    %cst_80 = arith.constant 0.000000e+00 : f32
    %157 = vector.broadcast %cst_80 : f32 to vector<32x128xf32>
    %158 = arith.select %147, %148, %157 : vector<32x128xi1>, vector<32x128xf32>
    %159 = vector.extract_strided_slice %158 {offsets = [0, 0], sizes = [8, 128], strides = [1, 1]} : vector<32x128xf32> to vector<8x128xf32>
    %160 = vector.extract_strided_slice %158 {offsets = [8, 0], sizes = [8, 128], strides = [1, 1]} : vector<32x128xf32> to vector<8x128xf32>
    %161 = arith.addf %159, %160 : vector<8x128xf32>
    %162 = vector.extract_strided_slice %158 {offsets = [16, 0], sizes = [8, 128], strides = [1, 1]} : vector<32x128xf32> to vector<8x128xf32>
    %163 = arith.addf %161, %162 : vector<8x128xf32>
    %164 = vector.extract_strided_slice %158 {offsets = [24, 0], sizes = [8, 128], strides = [1, 1]} : vector<32x128xf32> to vector<8x128xf32>
    %165 = arith.addf %163, %164 : vector<8x128xf32>
    %166 = arith.addf %156, %165 : vector<8x128xf32>
    %c0_81 = arith.constant 0 : index
    %c3_82 = arith.constant 3 : index
    %c0_83 = arith.constant 0 : index
    %c0_84 = arith.constant 0 : index
    %167 = vector.load %arg6[%c0_81, %c3_82, %c0_83, %c0_84] : memref<1x7x8x128xf32, #tpu.memory_space<vmem>>, vector<1x1x8x128xf32>
    %168 = vector.shape_cast %167 : vector<1x1x8x128xf32> to vector<8x128xf32>
    %169 = vector.shape_cast %166 : vector<8x128xf32> to vector<1x1x8x128xf32>
    tpu.vector_store %arg6[%c0_81, %c3_82, %c0_83, %c0_84], %169 {strides = array<i32>} : memref<1x7x8x128xf32, #tpu.memory_space<vmem>>, vector<1x1x8x128xf32>,
    %c0_85 = arith.constant 0 : index
    %c4 = arith.constant 4 : index
    %c0_86 = arith.constant 0 : index
    %c0_87 = arith.constant 0 : index
    %170 = vector.load %arg6[%c0_85, %c4, %c0_86, %c0_87] : memref<1x7x8x128xf32, #tpu.memory_space<vmem>>, vector<1x1x8x128xf32>
    %171 = vector.shape_cast %170 : vector<1x1x8x128xf32> to vector<8x128xf32>
    %172 = vector.extract_strided_slice %154 {offsets = [0, 0], sizes = [8, 128], strides = [1, 1]} : vector<32x128xf32> to vector<8x128xf32>
    %173 = vector.extract_strided_slice %154 {offsets = [8, 0], sizes = [8, 128], strides = [1, 1]} : vector<32x128xf32> to vector<8x128xf32>
    %174 = arith.addf %172, %173 : vector<8x128xf32>
    %175 = vector.extract_strided_slice %154 {offsets = [16, 0], sizes = [8, 128], strides = [1, 1]} : vector<32x128xf32> to vector<8x128xf32>
    %176 = arith.addf %174, %175 : vector<8x128xf32>
    %177 = vector.extract_strided_slice %154 {offsets = [24, 0], sizes = [8, 128], strides = [1, 1]} : vector<32x128xf32> to vector<8x128xf32>
    %178 = arith.addf %176, %177 : vector<8x128xf32>
    %179 = arith.addf %171, %178 : vector<8x128xf32>
    %c0_88 = arith.constant 0 : index
    %c4_89 = arith.constant 4 : index
    %c0_90 = arith.constant 0 : index
    %c0_91 = arith.constant 0 : index
    %180 = vector.load %arg6[%c0_88, %c4_89, %c0_90, %c0_91] : memref<1x7x8x128xf32, #tpu.memory_space<vmem>>, vector<1x1x8x128xf32>
    %181 = vector.shape_cast %180 : vector<1x1x8x128xf32> to vector<8x128xf32>
    %182 = vector.shape_cast %179 : vector<8x128xf32> to vector<1x1x8x128xf32>
    tpu.vector_store %arg6[%c0_88, %c4_89, %c0_90, %c0_91], %182 {strides = array<i32>} : memref<1x7x8x128xf32, #tpu.memory_space<vmem>>, vector<1x1x8x128xf32>,
    %c0_92 = arith.constant 0 : index
    %c5 = arith.constant 5 : index
    %c0_93 = arith.constant 0 : index
    %c0_94 = arith.constant 0 : index
    %183 = vector.load %arg6[%c0_92, %c5, %c0_93, %c0_94] : memref<1x7x8x128xf32, #tpu.memory_space<vmem>>, vector<1x1x8x128xf32>
    %184 = vector.shape_cast %183 : vector<1x1x8x128xf32> to vector<8x128xf32>
    %cst_95 = arith.constant 1.000000e+00 : f32
    %cst_96 = arith.constant 0.000000e+00 : f32
    %185 = vector.broadcast %cst_95 : f32 to vector<32x128xf32>
    %186 = vector.broadcast %cst_96 : f32 to vector<32x128xf32>
    %187 = arith.select %147, %185, %186 : vector<32x128xi1>, vector<32x128xf32>
    %188 = vector.extract_strided_slice %187 {offsets = [0, 0], sizes = [8, 128], strides = [1, 1]} : vector<32x128xf32> to vector<8x128xf32>
    %189 = vector.extract_strided_slice %187 {offsets = [8, 0], sizes = [8, 128], strides = [1, 1]} : vector<32x128xf32> to vector<8x128xf32>
    %190 = arith.addf %188, %189 : vector<8x128xf32>
    %191 = vector.extract_strided_slice %187 {offsets = [16, 0], sizes = [8, 128], strides = [1, 1]} : vector<32x128xf32> to vector<8x128xf32>
    %192 = arith.addf %190, %191 : vector<8x128xf32>
    %193 = vector.extract_strided_slice %187 {offsets = [24, 0], sizes = [8, 128], strides = [1, 1]} : vector<32x128xf32> to vector<8x128xf32>
    %194 = arith.addf %192, %193 : vector<8x128xf32>
    %195 = arith.addf %184, %194 : vector<8x128xf32>
    %c0_97 = arith.constant 0 : index
    %c5_98 = arith.constant 5 : index
    %c0_99 = arith.constant 0 : index
    %c0_100 = arith.constant 0 : index
    %196 = vector.load %arg6[%c0_97, %c5_98, %c0_99, %c0_100] : memref<1x7x8x128xf32, #tpu.memory_space<vmem>>, vector<1x1x8x128xf32>
    %197 = vector.shape_cast %196 : vector<1x1x8x128xf32> to vector<8x128xf32>
    %198 = vector.shape_cast %195 : vector<8x128xf32> to vector<1x1x8x128xf32>
    tpu.vector_store %arg6[%c0_97, %c5_98, %c0_99, %c0_100], %198 {strides = array<i32>} : memref<1x7x8x128xf32, #tpu.memory_space<vmem>>, vector<1x1x8x128xf32>,
    %c0_101 = arith.constant 0 : index
    %c6 = arith.constant 6 : index
    %c0_102 = arith.constant 0 : index
    %c0_103 = arith.constant 0 : index
    %199 = vector.load %arg6[%c0_101, %c6, %c0_102, %c0_103] : memref<1x7x8x128xf32, #tpu.memory_space<vmem>>, vector<1x1x8x128xf32>
    %200 = vector.shape_cast %199 : vector<1x1x8x128xf32> to vector<8x128xf32>
    %201 = vector.extract_strided_slice %152 {offsets = [0, 0], sizes = [8, 128], strides = [1, 1]} : vector<32x128xf32> to vector<8x128xf32>
    %202 = vector.extract_strided_slice %152 {offsets = [8, 0], sizes = [8, 128], strides = [1, 1]} : vector<32x128xf32> to vector<8x128xf32>
    %203 = arith.addf %201, %202 : vector<8x128xf32>
    %204 = vector.extract_strided_slice %152 {offsets = [16, 0], sizes = [8, 128], strides = [1, 1]} : vector<32x128xf32> to vector<8x128xf32>
    %205 = arith.addf %203, %204 : vector<8x128xf32>
    %206 = vector.extract_strided_slice %152 {offsets = [24, 0], sizes = [8, 128], strides = [1, 1]} : vector<32x128xf32> to vector<8x128xf32>
    %207 = arith.addf %205, %206 : vector<8x128xf32>
    %208 = arith.subf %200, %207 : vector<8x128xf32>
    %c0_104 = arith.constant 0 : index
    %c6_105 = arith.constant 6 : index
    %c0_106 = arith.constant 0 : index
    %c0_107 = arith.constant 0 : index
    %209 = vector.load %arg6[%c0_104, %c6_105, %c0_106, %c0_107] : memref<1x7x8x128xf32, #tpu.memory_space<vmem>>, vector<1x1x8x128xf32>
    %210 = vector.shape_cast %209 : vector<1x1x8x128xf32> to vector<8x128xf32>
    %211 = vector.shape_cast %208 : vector<8x128xf32> to vector<1x1x8x128xf32>
    tpu.vector_store %arg6[%c0_104, %c6_105, %c0_106, %c0_107], %211 {strides = array<i32>} : memref<1x7x8x128xf32, #tpu.memory_space<vmem>>, vector<1x1x8x128xf32>,
    return
  }
  func.func @transform_0(%arg0: i32, %arg1: i32) -> (i32, i32, i32, i32) {
    %c0_i32 = arith.constant 0 : i32
    %c0_i32_0 = arith.constant 0 : i32
    %c0_i32_1 = arith.constant 0 : i32
    return %arg0, %c0_i32, %arg1, %c0_i32_0 : i32, i32, i32, i32
  }
  func.func @transform_1(%arg0: i32, %arg1: i32) -> (i32, i32, i32) {
    %c0_i32 = arith.constant 0 : i32
    %c0_i32_0 = arith.constant 0 : i32
    return %arg0, %arg1, %c0_i32 : i32, i32, i32
  }
  func.func @transform_2(%arg0: i32, %arg1: i32) -> (i32, i32) {
    %c0_i32 = arith.constant 0 : i32
    %c0_i32_0 = arith.constant 0 : i32
    %c0_i32_1 = arith.constant 0 : i32
    return %c0_i32, %c0_i32_0 : i32, i32
  }
  func.func @transform_3(%arg0: i32, %arg1: i32) -> i32 {
    %c0_i32 = arith.constant 0 : i32
    %c0_i32_0 = arith.constant 0 : i32
    return %c0_i32 : i32
  }
  func.func @transform_4(%arg0: i32, %arg1: i32) -> (i32, i32, i32, i32) {
    %c0_i32 = arith.constant 0 : i32
    %c0_i32_0 = arith.constant 0 : i32
    %c0_i32_1 = arith.constant 0 : i32
    %c0_i32_2 = arith.constant 0 : i32
    return %arg0, %c0_i32, %c0_i32_0, %c0_i32_1 : i32, i32, i32, i32
  }
}

</mosaic_0001>

<llo_original>
// kernel: tpu_custom_call.1
$region0: #{tpu_custom_call.1}
  #allocation0 [shape = 'u32[]', space=smem, size = 0x4, offset = 0x4, fixed_abs, tag = 'smem constant byte address 0x4 - core index']
  #allocation1 [shape = 'u32[72,128]{1,0:T(1,128)}', space=vmem, size = 0x9000, scoped, tag = 'internal scratch']
  %s0 = inlined_call_operand.hbm [shape: f32[2,4,32,128], index: 0, kind: input, shape index: {}]
  %s1 = inlined_call_operand.hbm [shape: s8[2,32,128], index: 1, kind: input, shape index: {}]
  %s2 = inlined_call_operand.hbm [shape: f32[3,4], index: 2, kind: input, shape index: {}]
  %s3 = inlined_call_operand.vmem [shape: f32[3], index: 3, kind: input, shape index: {}]
  %s4 = inlined_call_operand.hbm [shape: f32[2,7,8,128], index: 4, kind: output, shape index: {}]
  %s5 = sld [smem:[#allocation0]]
  $region69: #{tpu_custom_call.1} parent=0
    _
  %s7 = ssub.s32 1, %s5
  %s8 = scalar_select 0, %s7, %s5
  $region1: #{tpu_custom_call.1} parent=0
    #allocation2 [shape = 'u8[131072]{0}', space=vmem, size = 0x20000, scoped, tag = 'input window, operand 0']
    #allocation3 [shape = 's32[2]{0}', space=sflag, size = 0x8, scoped, tag = 'scoped memory for tpu_custom_call.1']
    #allocation4 [shape = 's32[2]{0}', space=sflag, size = 0x8, scoped, tag = 'scoped memory for tpu_custom_call.1']
    #allocation5 [shape = 's32[2]{0}', space=sflag, size = 0x8, scoped, tag = 'scoped memory for tpu_custom_call.1']
    #allocation6 [shape = 's32[2]{0}', space=sflag, size = 0x8, scoped, tag = 'scoped memory for tpu_custom_call.1']
    #allocation7 [shape = 'u8[8192]{0}', space=vmem, size = 0x2000, scoped, tag = 'input window, operand 1']
    #allocation8 [shape = 's32[2]{0}', space=sflag, size = 0x8, scoped, tag = 'scoped memory for tpu_custom_call.1']
    #allocation9 [shape = 'u8[2048]{0}', space=smem, size = 0x800, scoped, tag = 'input window, operand 2, single buffered']
    #allocation10 [shape = 'u8[512]{0}', space=smem, size = 0x200, scoped, tag = 'input window, operand 3, single buffered']
    #allocation11 [shape = 'u8[57344]{0}', space=vmem, size = 0xe000, scoped, tag = 'output window, operand 0']
    %9 = vsyncpa [#allocation3], 0
    %s10 = scalar_lea.sflag [#allocation3], 1
    %11 = vsyncpa %s10, 0
    %12 = vsyncpa [#allocation8], 0
    %s13 = scalar_lea.sflag [#allocation8], 1
    %14 = vsyncpa %s13, 0
    %15 = vsyncpa [#allocation5], 0
    %16 = vsyncpa [#allocation6], 0
    %17 = vsyncpa [#allocation4], 0
    %s18 = scalar_lea.sflag [#allocation4], 1
    %19 = vsyncpa %s18, 0
    loop: start=0, step=1, limit=4
    $region2: #{tpu_custom_call.1} parent=1 // loop_pre_header
      _
    $region3: #{tpu_custom_call.1} parent=1 // loop_header
      %s21 = sphi 0, %s25
      %p22 = scmp.ge.s32.totalorder %s21, 4
      %s28 = sphi 0, %s40
      %s29 = sphi 0, %s36
      %s30 = sphi 0, %s28
      %s31 = sphi 0, %s29
      %s32 = sphi 0, %s30
      %s33 = sphi 0, %s31
      %s45 = sphi 0, %s47
      %s48 = sphi 0, %s45
      %s49 = sphi 0, %s48
      %s65 = sphi 0, %s49
      %s73 = sphi 0, %s75
      %s76 = sphi 0, %s73
      %s77 = sphi 0, %s76
      %s93 = sphi 0, %s77
      %s97 = sphi 0, %s97
      %s99 = sphi 0, %s97
      %s100 = sphi 0, %s99
      %s114 = sphi 0, %s100
      %s118 = sphi 0, %s118
      %s120 = sphi 0, %s118
      %s121 = sphi 0, %s120
      %s135 = sphi 0, %s121
      %s141 = sphi 0, %s143
      %s144 = sphi 0, %s141
      %s145 = sphi 0, %s144
      %s161 = sphi 0, %s145
    $region4: #{tpu_custom_call.1} parent=1 // loop_header_branch
      %24 = sbr.rel (%p22) target = $region8
    $region5: #{tpu_custom_call.1} parent=1 // loop_body
      %s26 = ssub.s32 %s21, 1
      %s27 = ssub.s32 %s21, 2
      %s34 = sadd.s32 1, %s29
      %p35 = scmp.ge.s32.totalorder %s34, 1
      %s36 = scalar_select %p35, 0, %s34
      %s37 = sadd.s32 1, %s28
      %s38 = scalar_select %p35, %s37, %s28
      %p39 = scmp.ge.s32.totalorder %s38, 2
      %s40 = scalar_select %p39, 0, %s38
      %s41 = ssub.s32 %s28, %s40
      %s42 = ssub.s32 %s29, %s36
      %s43 = sor.u32 %s41, %s42
      %p44 = scmp.eq.s32.totalorder %s43, 0
      %s46 = sadd.s32 %s45, 1
      %s47 = scalar_select %p44, %s45, %s46
      %p50 = pneg %p44
      %p51 = scmp.eq.s32.totalorder %s21, 1
      %p52 = por %p50, %p51
      %p53 = scmp.ne.s32.totalorder %s45, %s48
      %p54 = scmp.eq.s32.totalorder %s21, 0
      %p55 = por %p53, %p54
      %p56 = scmp.ne.s32.totalorder %s45, %s48
      %p57 = scmp.eq.s32.totalorder %s26, 1
      %p58 = por %p56, %p57
      %p59 = scmp.ne.s32.totalorder %s48, %s49
      %p60 = scmp.eq.s32.totalorder %s26, 0
      %p61 = por %p59, %p60
      %p62 = scmp.ne.s32.totalorder %s48, %s49
      %p63 = scmp.eq.s32.totalorder %s27, 1
      %p64 = por %p62, %p63
      %p66 = scmp.ne.s32.totalorder %s49, %s65
      %p67 = scmp.eq.s32.totalorder %s27, 0
      %p68 = por %p66, %p67
      %s69 = ssub.s32 %s28, %s40
      %s70 = ssub.s32 %s29, %s36
      %s71 = sor.u32 %s69, %s70
      %p72 = scmp.eq.s32.totalorder %s71, 0
      %s74 = sadd.s32 %s73, 1
      %s75 = scalar_select %p72, %s73, %s74
      %p78 = pneg %p72
      %p79 = scmp.eq.s32.totalorder %s21, 1
      %p80 = por %p78, %p79
      %p81 = scmp.ne.s32.totalorder %s73, %s76
      %p82 = scmp.eq.s32.totalorder %s21, 0
      %p83 = por %p81, %p82
      %p84 = scmp.ne.s32.totalorder %s73, %s76
      %p85 = scmp.eq.s32.totalorder %s26, 1
      %p86 = por %p84, %p85
      %p87 = scmp.ne.s32.totalorder %s76, %s77
      %p88 = scmp.eq.s32.totalorder %s26, 0
      %p89 = por %p87, %p88
      %p90 = scmp.ne.s32.totalorder %s76, %s77
      %p91 = scmp.eq.s32.totalorder %s27, 1
      %p92 = por %p90, %p91
      %p94 = scmp.ne.s32.totalorder %s77, %s93
      %p95 = scmp.eq.s32.totalorder %s27, 0
      %p96 = por %p94, %p95
      %s98 = sadd.s32 %s97, 1
      %p101 = scmp.eq.s32.totalorder %s21, 1
      %p102 = scmp.ne.s32.totalorder %s97, %s99
      %p103 = scmp.eq.s32.totalorder %s21, 0
      %p104 = por %p102, %p103
      %p105 = scmp.ne.s32.totalorder %s97, %s99
      %p106 = scmp.eq.s32.totalorder %s26, 1
      %p107 = por %p105, %p106
      %p108 = scmp.ne.s32.totalorder %s99, %s100
      %p109 = scmp.eq.s32.totalorder %s26, 0
      %p110 = por %p108, %p109
      %p111 = scmp.ne.s32.totalorder %s99, %s100
      %p112 = scmp.eq.s32.totalorder %s27, 1
      %p113 = por %p111, %p112
      %p115 = scmp.ne.s32.totalorder %s100, %s114
      %p116 = scmp.eq.s32.totalorder %s27, 0
      %p117 = por %p115, %p116
      %s119 = sadd.s32 %s118, 1
      %p122 = scmp.eq.s32.totalorder %s21, 1
      %p123 = scmp.ne.s32.totalorder %s118, %s120
      %p124 = scmp.eq.s32.totalorder %s21, 0
      %p125 = por %p123, %p124
      %p126 = scmp.ne.s32.totalorder %s118, %s120
      %p127 = scmp.eq.s32.totalorder %s26, 1
      %p128 = por %p126, %p127
      %p129 = scmp.ne.s32.totalorder %s120, %s121
      %p130 = scmp.eq.s32.totalorder %s26, 0
      %p131 = por %p129, %p130
      %p132 = scmp.ne.s32.totalorder %s120, %s121
      %p133 = scmp.eq.s32.totalorder %s27, 1
      %p134 = por %p132, %p133
      %p136 = scmp.ne.s32.totalorder %s121, %s135
      %p137 = scmp.eq.s32.totalorder %s27, 0
      %p138 = por %p136, %p137
      %s139 = ssub.s32 %s28, %s40
      %p140 = scmp.eq.s32.totalorder %s139, 0
      %s142 = sadd.s32 %s141, 1
      %s143 = scalar_select %p140, %s141, %s142
      %p146 = pneg %p140
      %p147 = scmp.eq.s32.totalorder %s21, 1
      %p148 = por %p146, %p147
      %p149 = scmp.ne.s32.totalorder %s141, %s144
      %p150 = scmp.eq.s32.totalorder %s21, 0
      %p151 = por %p149, %p150
      %p152 = scmp.ne.s32.totalorder %s141, %s144
      %p153 = scmp.eq.s32.totalorder %s26, 1
      %p154 = por %p152, %p153
      %p155 = scmp.ne.s32.totalorder %s144, %s145
      %p156 = scmp.eq.s32.totalorder %s26, 0
      %p157 = por %p155, %p156
      %p158 = scmp.ne.s32.totalorder %s144, %s145
      %p159 = scmp.eq.s32.totalorder %s27, 1
      %p160 = por %p158, %p159
      %p162 = scmp.ne.s32.totalorder %s145, %s161
      %p163 = scmp.eq.s32.totalorder %s27, 0
      %p164 = por %p162, %p163
      %p165 = scmp.le.s32.totalorder 1, %s21
      %p166 = scmp.lt.s32.totalorder %s21, 3
      %p167 = pnand %p165, %p166
      %p168 = pneg %p167
      // Predicated region
      $region9: #{tpu_custom_call.1} parent=5 // pred_check
        _
      $region10: #{tpu_custom_call.1} parent=5 // pred_check_branch
        %170 = sbr.rel (%p167) target = $region12
      $region11: #{tpu_custom_call.1} parent=5 // pred_region
        %s171 = ssub.s32 %s21, 1
        // Predicated region
        $region13: #{tpu_custom_call.1} parent=11 // pred_check
          %p172 = pneg %p110
        $region14: #{tpu_custom_call.1} parent=11 // pred_check_branch
          %174 = sbr.rel (%p172) target = $region16
        $region15: #{tpu_custom_call.1} parent=11 // pred_region
          %176 = vsyncadd [#allocation5], 0
          %s178 = sshll.u32 %s2, 4
          %s179 = int_to_ptr.hbm [resolvable:$true] %s178
          %181 = dma.hbm_to_smem %s179, 64, [#allocation9], [#allocation5]
        $region16: #{tpu_custom_call.1} parent=11 // pred_fallthru
          _
        // Predicated region
        $region17: #{tpu_custom_call.1} parent=11 // pred_check
          %p182 = pneg %p131
        $region18: #{tpu_custom_call.1} parent=11 // pred_check_branch
          %184 = sbr.rel (%p182) target = $region20
        $region19: #{tpu_custom_call.1} parent=11 // pred_region
          %186 = vsyncadd [#allocation6], 0
          %s188 = sshll.u32 %s3, 4
          %s189 = int_to_ptr.vmem [resolvable:$true] %s188
          %191 = dma.vmem_to_smem %s189, 16, [#allocation10], [#allocation6]
        $region20: #{tpu_custom_call.1} parent=11 // pred_fallthru
          _
      $region12: #{tpu_custom_call.1} parent=5 // pred_fallthru
        _
      %p192 = scmp.lt.s32.totalorder %s21, 2
      // Predicated region
      $region21: #{tpu_custom_call.1} parent=5 // pred_check
        %p193 = pneg %p192
      $region22: #{tpu_custom_call.1} parent=5 // pred_check_branch
        %195 = sbr.rel (%p193) target = $region24
      $region23: #{tpu_custom_call.1} parent=5 // pred_region
        // Predicated region
        $region25: #{tpu_custom_call.1} parent=23 // pred_check
          %p196 = pneg %p55
        $region26: #{tpu_custom_call.1} parent=23 // pred_check_branch
          %198 = sbr.rel (%p196) target = $region28
        $region27: #{tpu_custom_call.1} parent=23 // pred_region
          %s199 = sand.u32 %s45, 1
          %s200 = scalar_lea.sflag [#allocation3], %s199
          %s201 = sand.u32 %s45, 1
          %s202 = smul.addr %s201, 128
          %s203 = scalar_lea.vmem [#allocation2], %s202
          %s204 = smul.u32 4, %s29
          %206 = vsyncadd %s200, 0
          %s207 = smul.addr %s28, 16
          %s208 = sadd.s32 %s204, %s207
          %s209 = smul.addr %s208, 8
          %s210 = scalar_lea.hbm %s0, %s209
          %s211 = sshll.u32 %s210, 4
          %s212 = int_to_ptr.hbm [resolvable:$true] %s211
          %s213 = sshll.u32 %s203, 4
          %s214 = int_to_ptr.vmem [resolvable:$true] %s213
          %219 = dma.hbm_to_vmem [thread:$0]  %s212, 2048, %s214, %s200, 128, 128, 8
        $region28: #{tpu_custom_call.1} parent=23 // pred_fallthru
          _
        // Predicated region
        $region29: #{tpu_custom_call.1} parent=23 // pred_check
          %p220 = pneg %p83
        $region30: #{tpu_custom_call.1} parent=23 // pred_check_branch
          %222 = sbr.rel (%p220) target = $region32
        $region31: #{tpu_custom_call.1} parent=23 // pred_region
          %s223 = sand.u32 %s73, 1
          %s224 = scalar_lea.sflag [#allocation8], %s223
          %s225 = sand.u32 %s73, 1
          %s226 = smul.addr %s225, 8
          %s227 = scalar_lea.vmem [#allocation7], %s226
          %229 = vsyncadd %s224, 0
          %s230 = sadd.s32 %s29, %s28
          %s231 = smul.addr %s230, 8
          %s232 = scalar_lea.hbm %s1, %s231
          %s234 = sshll.u32 %s232, 4
          %s235 = int_to_ptr.hbm [resolvable:$true] %s234
          %s236 = sshll.u32 %s227, 4
          %s237 = int_to_ptr.vmem [resolvable:$true] %s236
          %239 = dma.hbm_to_vmem [thread:$0]  %s235, 128, %s237, %s224
        $region32: #{tpu_custom_call.1} parent=23 // pred_fallthru
          _
      $region24: #{tpu_custom_call.1} parent=5 // pred_fallthru
        _
      %p240 = scmp.le.s32.totalorder 1, %s21
      %p241 = scmp.lt.s32.totalorder %s21, 3
      %p242 = pnand %p240, %p241
      %p243 = pneg %p242
      // Predicated region
      $region33: #{tpu_custom_call.1} parent=5 // pred_check
        _
      $region34: #{tpu_custom_call.1} parent=5 // pred_check_branch
        %245 = sbr.rel (%p242) target = $region36
      $region35: #{tpu_custom_call.1} parent=5 // pred_region
        %s246 = ssub.s32 %s21, 1
        %s247 = sand.u32 %s48, 1
        %s248 = scalar_lea.sflag [#allocation3], %s247
        %s249 = sand.u32 %s48, 1
        %s250 = smul.addr %s249, 128
        %s251 = scalar_lea.vmem [#allocation2], %s250
        // Predicated region
        $region37: #{tpu_custom_call.1} parent=35 // pred_check
          %p252 = pneg %p61
        $region38: #{tpu_custom_call.1} parent=35 // pred_check_branch
          %254 = sbr.rel (%p252) target = $region40
        $region39: #{tpu_custom_call.1} parent=35 // pred_region
          %256 = dma.done %s248, 2048
        $region40: #{tpu_custom_call.1} parent=35 // pred_fallthru
          _
        %s257 = sand.u32 %s76, 1
        %s258 = scalar_lea.sflag [#allocation8], %s257
        %s259 = sand.u32 %s76, 1
        %s260 = smul.addr %s259, 8
        %s261 = scalar_lea.vmem [#allocation7], %s260
        // Predicated region
        $region41: #{tpu_custom_call.1} parent=35 // pred_check
          %p262 = pneg %p89
        $region42: #{tpu_custom_call.1} parent=35 // pred_check_branch
          %264 = sbr.rel (%p262) target = $region44
        $region43: #{tpu_custom_call.1} parent=35 // pred_region
          %266 = dma.done %s258, 128
        $region44: #{tpu_custom_call.1} parent=35 // pred_fallthru
          _
        // Predicated region
        $region45: #{tpu_custom_call.1} parent=35 // pred_check
          %p267 = pneg %p110
        $region46: #{tpu_custom_call.1} parent=35 // pred_check_branch
          %269 = sbr.rel (%p267) target = $region48
        $region47: #{tpu_custom_call.1} parent=35 // pred_region
          %271 = dma.done [#allocation5], 64
        $region48: #{tpu_custom_call.1} parent=35 // pred_fallthru
          _
        // Predicated region
        $region49: #{tpu_custom_call.1} parent=35 // pred_check
          %p272 = pneg %p131
        $region50: #{tpu_custom_call.1} parent=35 // pred_check_branch
          %274 = sbr.rel (%p272) target = $region52
        $region51: #{tpu_custom_call.1} parent=35 // pred_region
          %276 = dma.done [#allocation6], 16
        $region52: #{tpu_custom_call.1} parent=35 // pred_fallthru
          _
        %277 = sfence
        %s278 = sand.u32 %s48, 1
        %s279 = scalar_lea.sflag [#allocation3], %s278
        %s280 = sand.u32 %s48, 1
        %s281 = smul.addr %s280, 128
        %s282 = scalar_lea.vmem [#allocation2], %s281
        %p283 = pneg %p61
        %p284 = pneg %p58
        %s285 = sand.u32 %s76, 1
        %s286 = scalar_lea.sflag [#allocation8], %s285
        %s287 = sand.u32 %s76, 1
        %s288 = smul.addr %s287, 8
        %s289 = scalar_lea.vmem [#allocation7], %s288
        %p290 = pneg %p89
        %p291 = pneg %p86
        %p292 = pneg %p110
        %p293 = pneg %p107
        %p294 = pneg %p131
        %p295 = pneg %p128
        %p296 = pneg %p157
        %p297 = pneg %p154
        %s298 = sand.u32 %s144, 1
        %s299 = scalar_lea.sflag [#allocation4], %s298
        %s300 = sand.u32 %s144, 1
        %s301 = smul.addr %s300, 56
        %s302 = scalar_lea.vmem [#allocation11], %s301
        %s303 = smul.u32 4, %s31
        %p304 = scmp.eq.s32.totalorder %s31, 0
        // Predicated region
        $region53: #{tpu_custom_call.1} parent=35 // pred_check
          %p305 = pneg %p304
        $region54: #{tpu_custom_call.1} parent=35 // pred_check_branch
          %307 = sbr.rel (%p305) target = $region56
        $region55: #{tpu_custom_call.1} parent=35 // pred_region
          %308 = vst [vmem:[%s302] sm:$0xff] 0.0
          %309 = vst [vmem:[%s302 + $0x8] sm:$0xff] 0.0
          %310 = vst [vmem:[%s302 + $0x10] sm:$0xff] 0.0
          %311 = vst [vmem:[%s302 + $0x18] sm:$0xff] 0.0
          %312 = vst [vmem:[%s302 + $0x20] sm:$0xff] 0.0
          %313 = vst [vmem:[%s302 + $0x28] sm:$0xff] 0.0
          %314 = vst [vmem:[%s302 + $0x30] sm:$0xff] 0.0
        $region56: #{tpu_custom_call.1} parent=35 // pred_fallthru
          _
        %v315 = vld [vmem:[%s251] sm:$0xff]
        %v316 = vld [vmem:[%s251 + $0x8] sm:$0xff]
        %v317 = vld [vmem:[%s251 + $0x10] sm:$0xff]
        %v318 = vld [vmem:[%s251 + $0x18] sm:$0xff]
        %s319 = scalar_lea.vmem %s251, 32 [#allocation2]
        %v320 = vld [vmem:[%s319] sm:$0xff]
        %v321 = vld [vmem:[%s319 + $0x8] sm:$0xff]
        %v322 = vld [vmem:[%s319 + $0x10] sm:$0xff]
        %v323 = vld [vmem:[%s319 + $0x18] sm:$0xff]
        %s324 = scalar_lea.vmem %s251, 64 [#allocation2]
        %v325 = vld [vmem:[%s324] sm:$0xff]
        %v326 = vld [vmem:[%s324 + $0x8] sm:$0xff]
        %v327 = vld [vmem:[%s324 + $0x10] sm:$0xff]
        %v328 = vld [vmem:[%s324 + $0x18] sm:$0xff]
        %s329 = scalar_lea.vmem %s251, 96 [#allocation2]
        %v330 = vld [vmem:[%s329] sm:$0xff]
        %v331 = vld [vmem:[%s329 + $0x8] sm:$0xff]
        %v332 = vld [vmem:[%s329 + $0x10] sm:$0xff]
        %v333 = vld [vmem:[%s329 + $0x18] sm:$0xff]
        %v334 = vld [vmem:[%s261] sm:$0xff]
        %v335 = vunpack.c.0.s8 %v334
        %v336 = vunpack.c.1.s8 %v334
        %v337 = vunpack.c.2.s8 %v334
        %v338 = vunpack.c.3.s8 %v334
        %s339 = smul.u32 %s31, 32
        %s340 = ssub.s32 2, %s339
        %v341 = vlaneseq
        %v342 = vshrl.u32 %v341, 7
        %v343 = vadd.s32 %v342, 8
        %v344 = vadd.s32 %v342, 16
        %v345 = vadd.s32 %v342, 24
        %v346 = vstv %s340
        %vm347 = vcmp.lt.s32.totalorder %v342, %v346
        %vm348 = vcmp.lt.s32.totalorder %v343, %v346
        %vm349 = vcmp.lt.s32.totalorder %v344, %v346
        %vm350 = vcmp.lt.s32.totalorder %v345, %v346
        %s351 = sld [smem:[#allocation9]]
        %v352 = vstv %s351
        %v353 = vmul.f32 %v315, %v352
        %v354 = vmul.f32 %v316, %v352
        %v355 = vmul.f32 %v317, %v352
        %v356 = vmul.f32 %v318, %v352
        %s357 = sld [smem:[#allocation10]]
        %v358 = vstv %s357
        %v359 = vadd.f32 %v353, %v358
        %v360 = vadd.f32 %v354, %v358
        %v361 = vadd.f32 %v355, %v358
        %v362 = vadd.f32 %v356, %v358
        %s363 = sld [smem:[#allocation9 + $0x1]]
        %v364 = vstv %s363
        %v365 = vmul.f32 %v320, %v364
        %v366 = vmul.f32 %v321, %v364
        %v367 = vmul.f32 %v322, %v364
        %v368 = vmul.f32 %v323, %v364
        %v369 = vadd.f32 %v359, %v365
        %v370 = vadd.f32 %v360, %v366
        %v371 = vadd.f32 %v361, %v367
        %v372 = vadd.f32 %v362, %v368
        %s373 = sld [smem:[#allocation9 + $0x2]]
        %v374 = vstv %s373
        %v375 = vmul.f32 %v325, %v374
        %v376 = vmul.f32 %v326, %v374
        %v377 = vmul.f32 %v327, %v374
        %v378 = vmul.f32 %v328, %v374
        %v379 = vadd.f32 %v369, %v375
        %v380 = vadd.f32 %v370, %v376
        %v381 = vadd.f32 %v371, %v377
        %v382 = vadd.f32 %v372, %v378
        %s383 = sld [smem:[#allocation9 + $0x3]]
        %v384 = vstv %s383
        %v385 = vmul.f32 %v330, %v384
        %v386 = vmul.f32 %v331, %v384
        %v387 = vmul.f32 %v332, %v384
        %v388 = vmul.f32 %v333, %v384
        %v389 = vadd.f32 %v379, %v385
        %v390 = vadd.f32 %v380, %v386
        %v391 = vadd.f32 %v381, %v387
        %v392 = vadd.f32 %v382, %v388
        %s393 = sld [smem:[#allocation9 + $0x80]]
        %v394 = vstv %s393
        %v395 = vmul.f32 %v315, %v394
        %v396 = vmul.f32 %v316, %v394
        %v397 = vmul.f32 %v317, %v394
        %v398 = vmul.f32 %v318, %v394
        %s399 = sld [smem:[#allocation10 + $0x1]]
        %v400 = vstv %s399
        %v401 = vadd.f32 %v395, %v400
        %v402 = vadd.f32 %v396, %v400
        %v403 = vadd.f32 %v397, %v400
        %v404 = vadd.f32 %v398, %v400
        %s405 = sld [smem:[#allocation9 + $0x81]]
        %v406 = vstv %s405
        %v407 = vmul.f32 %v320, %v406
        %v408 = vmul.f32 %v321, %v406
        %v409 = vmul.f32 %v322, %v406
        %v410 = vmul.f32 %v323, %v406
        %v411 = vadd.f32 %v401, %v407
        %v412 = vadd.f32 %v402, %v408
        %v413 = vadd.f32 %v403, %v409
        %v414 = vadd.f32 %v404, %v410
        %s415 = sld [smem:[#allocation9 + $0x82]]
        %v416 = vstv %s415
        %v417 = vmul.f32 %v325, %v416
        %v418 = vmul.f32 %v326, %v416
        %v419 = vmul.f32 %v327, %v416
        %v420 = vmul.f32 %v328, %v416
        %v421 = vadd.f32 %v411, %v417
        %v422 = vadd.f32 %v412, %v418
        %v423 = vadd.f32 %v413, %v419
        %v424 = vadd.f32 %v414, %v420
        %s425 = sld [smem:[#allocation9 + $0x83]]
        %v426 = vstv %s425
        %v427 = vmul.f32 %v330, %v426
        %v428 = vmul.f32 %v331, %v426
        %v429 = vmul.f32 %v332, %v426
        %v430 = vmul.f32 %v333, %v426
        %v431 = vadd.f32 %v421, %v427
        %v432 = vadd.f32 %v422, %v428
        %v433 = vadd.f32 %v423, %v429
        %v434 = vadd.f32 %v424, %v430
        %s435 = sld [smem:[#allocation9 + $0x100]]
        %v436 = vstv %s435
        %v437 = vmul.f32 %v315, %v436
        %v438 = vmul.f32 %v316, %v436
        %v439 = vmul.f32 %v317, %v436
        %v440 = vmul.f32 %v318, %v436
        %s441 = sld [smem:[#allocation10 + $0x2]]
        %v442 = vstv %s441
        %v443 = vadd.f32 %v437, %v442
        %v444 = vadd.f32 %v438, %v442
        %v445 = vadd.f32 %v439, %v442
        %v446 = vadd.f32 %v440, %v442
        %s447 = sld [smem:[#allocation9 + $0x101]]
        %v448 = vstv %s447
        %v449 = vmul.f32 %v320, %v448
        %v450 = vmul.f32 %v321, %v448
        %v451 = vmul.f32 %v322, %v448
        %v452 = vmul.f32 %v323, %v448
        %v453 = vadd.f32 %v443, %v449
        %v454 = vadd.f32 %v444, %v450
        %v455 = vadd.f32 %v445, %v451
        %v456 = vadd.f32 %v446, %v452
        %s457 = sld [smem:[#allocation9 + $0x102]]
        %v458 = vstv %s457
        %v459 = vmul.f32 %v325, %v458
        %v460 = vmul.f32 %v326, %v458
        %v461 = vmul.f32 %v327, %v458
        %v462 = vmul.f32 %v328, %v458
        %v463 = vadd.f32 %v453, %v459
        %v464 = vadd.f32 %v454, %v460
        %v465 = vadd.f32 %v455, %v461
        %v466 = vadd.f32 %v456, %v462
        %s467 = sld [smem:[#allocation9 + $0x103]]
        %v468 = vstv %s467
        %v469 = vmul.f32 %v330, %v468
        %v470 = vmul.f32 %v331, %v468
        %v471 = vmul.f32 %v332, %v468
        %v472 = vmul.f32 %v333, %v468
        %v473 = vadd.f32 %v463, %v469
        %v474 = vadd.f32 %v464, %v470
        %v475 = vadd.f32 %v465, %v471
        %v476 = vadd.f32 %v466, %v472
        %v477 = vmax.f32 %v389, %v431
        %v478 = vmax.f32 %v390, %v432
        %v479 = vmax.f32 %v391, %v433
        %v480 = vmax.f32 %v392, %v434
        %v481 = vmax.f32 %v477, %v473
        %v482 = vmax.f32 %v478, %v474
        %v483 = vmax.f32 %v479, %v475
        %v484 = vmax.f32 %v480, %v476
        %v485 = vsub.f32 %v389, %v481
        %v486 = vsub.f32 %v390, %v482
        %v487 = vsub.f32 %v391, %v483
        %v488 = vsub.f32 %v392, %v484
        %v489 = vsub.f32 %v431, %v481
        %v490 = vsub.f32 %v432, %v482
        %v491 = vsub.f32 %v433, %v483
        %v492 = vsub.f32 %v434, %v484
        %v493 = vsub.f32 %v473, %v481
        %v494 = vsub.f32 %v474, %v482
        %v495 = vsub.f32 %v475, %v483
        %v496 = vsub.f32 %v476, %v484
        %v497 = vmul.f32 %v485, 1.442695
        %v498 = vpow.pop %v497
        %v499 = vmul.f32 %v486, 1.442695
        %v500 = vpow.pop %v499
        %v501 = vmul.f32 %v487, 1.442695
        %v502 = vpow.pop %v501
        %v503 = vmul.f32 %v488, 1.442695
        %v504 = vpow.pop %v503
        %v505 = vmul.f32 %v489, 1.442695
        %v506 = vpow.pop %v505
        %v507 = vmul.f32 %v490, 1.442695
        %v508 = vpow.pop %v507
        %v509 = vmul.f32 %v491, 1.442695
        %v510 = vpow.pop %v509
        %v511 = vmul.f32 %v492, 1.442695
        %v512 = vpow.pop %v511
        %v513 = vmul.f32 %v493, 1.442695
        %v514 = vpow.pop %v513
        %v515 = vmul.f32 %v494, 1.442695
        %v516 = vpow.pop %v515
        %v517 = vmul.f32 %v495, 1.442695
        %v518 = vpow.pop %v517
        %v519 = vmul.f32 %v496, 1.442695
        %v520 = vpow.pop %v519
        %v521 = vadd.f32 %v498, %v506
        %v522 = vadd.f32 %v500, %v508
        %v523 = vadd.f32 %v502, %v510
        %v524 = vadd.f32 %v504, %v512
        %v525 = vadd.f32 %v521, %v514
        %v526 = vadd.f32 %v522, %v516
        %v527 = vadd.f32 %v523, %v518
        %v528 = vadd.f32 %v524, %v520
        %v529 = vrcp.pop %v525
        %v530 = vmul.f32 %v525, %v529
        %v531 = vsub.f32 1.0, %v530
        %v532 = vmul.f32 %v529, %v531
        %v533 = vadd.f32 %v529, %v532
        %vm534 = vweird.f32 %v525
        %vm535 = vweird.f32 %v529
        %vm536 = vmor %vm534, %vm535
        %v537 = vsel %vm536, %v529, %v533
        %v538 = vand.u32 2147483647, %v525
        %vm539 = vcmp.eq.f32.partialorder %v538, 8.507059e+37
        %v540 = vand.u32 %v525, 2147483648
        %v541 = vor.u32 1.1754944e-38, %v540
        %v542 = vsel %vm539, %v541, %v537
        %v543 = vrcp.pop %v526
        %v544 = vmul.f32 %v526, %v543
        %v545 = vsub.f32 1.0, %v544
        %v546 = vmul.f32 %v543, %v545
        %v547 = vadd.f32 %v543, %v546
        %vm548 = vweird.f32 %v526
        %vm549 = vweird.f32 %v543
        %vm550 = vmor %vm548, %vm549
        %v551 = vsel %vm550, %v543, %v547
        %v552 = vand.u32 2147483647, %v526
        %vm553 = vcmp.eq.f32.partialorder %v552, 8.507059e+37
        %v554 = vand.u32 %v526, 2147483648
        %v555 = vor.u32 1.1754944e-38, %v554
        %v556 = vsel %vm553, %v555, %v551
        %v557 = vrcp.pop %v527
        %v558 = vmul.f32 %v527, %v557
        %v559 = vsub.f32 1.0, %v558
        %v560 = vmul.f32 %v557, %v559
        %v561 = vadd.f32 %v557, %v560
        %vm562 = vweird.f32 %v527
        %vm563 = vweird.f32 %v557
        %vm564 = vmor %vm562, %vm563
        %v565 = vsel %vm564, %v557, %v561
        %v566 = vand.u32 2147483647, %v527
        %vm567 = vcmp.eq.f32.partialorder %v566, 8.507059e+37
        %v568 = vand.u32 %v527, 2147483648
        %v569 = vor.u32 1.1754944e-38, %v568
        %v570 = vsel %vm567, %v569, %v565
        %v571 = vrcp.pop %v528
        %v572 = vmul.f32 %v528, %v571
        %v573 = vsub.f32 1.0, %v572
        %v574 = vmul.f32 %v571, %v573
        %v575 = vadd.f32 %v571, %v574
        %vm576 = vweird.f32 %v528
        %vm577 = vweird.f32 %v571
        %vm578 = vmor %vm576, %vm577
        %v579 = vsel %vm578, %v571, %v575
        %v580 = vand.u32 2147483647, %v528
        %vm581 = vcmp.eq.f32.partialorder %v580, 8.507059e+37
        %v582 = vand.u32 %v528, 2147483648
        %v583 = vor.u32 1.1754944e-38, %v582
        %v584 = vsel %vm581, %v583, %v579
        %v585 = vlog2.pop %v525
        %v586 = vmul.f32 %v585, 0.6931472
        %v587 = vlog2.pop %v526
        %v588 = vmul.f32 %v587, 0.6931472
        %v589 = vlog2.pop %v527
        %v590 = vmul.f32 %v589, 0.6931472
        %v591 = vlog2.pop %v528
        %v592 = vmul.f32 %v591, 0.6931472
        %vm593 = vcmp.eq.s32.totalorder %v335, 0
        %vm594 = vcmp.eq.s32.totalorder %v336, 0
        %vm595 = vcmp.eq.s32.totalorder %v337, 0
        %vm596 = vcmp.eq.s32.totalorder %v338, 0
        %vm597 = vmand %vm593, %vm347
        %vm598 = vmand %vm594, %vm348
        %vm599 = vmand %vm595, %vm349
        %vm600 = vmand %vm596, %vm350
        %v601 = vsub.f32 %v485, %v586
        %v602 = vsub.f32 %v486, %v588
        %v603 = vsub.f32 %v487, %v590
        %v604 = vsub.f32 %v488, %v592
        %v605 = vsel %vm597, %v601, 0.0
        %v606 = vsel %vm598, %v602, 0.0
        %v607 = vsel %vm599, %v603, 0.0
        %v608 = vsel %vm600, %v604, 0.0
        %vm609 = vcmp.eq.s32.totalorder %v335, 1
        %vm610 = vcmp.eq.s32.totalorder %v336, 1
        %vm611 = vcmp.eq.s32.totalorder %v337, 1
        %vm612 = vcmp.eq.s32.totalorder %v338, 1
        %vm613 = vmand %vm609, %vm347
        %vm614 = vmand %vm610, %vm348
        %vm615 = vmand %vm611, %vm349
        %vm616 = vmand %vm612, %vm350
        %v617 = vmul.f32 %v506, %v542
        %v618 = vmul.f32 %v508, %v556
        %v619 = vmul.f32 %v510, %v570
        %v620 = vmul.f32 %v512, %v584
        %v621 = vsub.f32 %v489, %v586
        %v622 = vsub.f32 %v490, %v588
        %v623 = vsub.f32 %v491, %v590
        %v624 = vsub.f32 %v492, %v592
        %v625 = vsel %vm613, %v621, 0.0
        %v626 = vsel %vm614, %v622, 0.0
        %v627 = vsel %vm615, %v623, 0.0
        %v628 = vsel %vm616, %v624, 0.0
        %v629 = vadd.f32 %v605, %v625
        %v630 = vadd.f32 %v606, %v626
        %v631 = vadd.f32 %v607, %v627
        %v632 = vadd.f32 %v608, %v628
        %v633 = vsel %vm347, %v617, 0.0
        %v634 = vsel %vm348, %v618, 0.0
        %v635 = vsel %vm349, %v619, 0.0
        %v636 = vsel %vm350, %v620, 0.0
        %v637 = vld [vmem:[%s302] sm:$0xff]
        %v638 = vsel %vm613, %v617, 0.0
        %v639 = vsel %vm614, %v618, 0.0
        %v640 = vsel %vm615, %v619, 0.0
        %v641 = vsel %vm616, %v620, 0.0
        %v642 = vadd.f32 %v638, %v639
        %v643 = vadd.f32 %v642, %v640
        %v644 = vadd.f32 %v643, %v641
        %v645 = vadd.f32 %v637, %v644
        %646 = vst [vmem:[%s302] sm:$0xff] %v645
        %s647 = scalar_lea.vmem %s302, 8 [#allocation11]
        %v648 = vld [vmem:[%s647] sm:$0xff]
        %v649 = vadd.f32 %v633, %v634
        %v650 = vadd.f32 %v649, %v635
        %v651 = vadd.f32 %v650, %v636
        %v652 = vadd.f32 %v648, %v651
        %653 = vst [vmem:[%s647] sm:$0xff] %v652
        %s654 = scalar_lea.vmem %s302, 16 [#allocation11]
        %v655 = vld [vmem:[%s654] sm:$0xff]
        %v656 = vsel %vm613, 1.0, 0.0
        %v657 = vsel %vm614, 1.0, 0.0
        %v658 = vsel %vm615, 1.0, 0.0
        %v659 = vsel %vm616, 1.0, 0.0
        %v660 = vadd.f32 %v656, %v657
        %v661 = vadd.f32 %v660, %v658
        %v662 = vadd.f32 %v661, %v659
        %v663 = vadd.f32 %v655, %v662
        %664 = vst [vmem:[%s654] sm:$0xff] %v663
        %vm665 = vcmp.eq.s32.totalorder %v335, 2
        %vm666 = vcmp.eq.s32.totalorder %v336, 2
        %vm667 = vcmp.eq.s32.totalorder %v337, 2
        %vm668 = vcmp.eq.s32.totalorder %v338, 2
        %vm669 = vmand %vm665, %vm347
        %vm670 = vmand %vm666, %vm348
        %vm671 = vmand %vm667, %vm349
        %vm672 = vmand %vm668, %vm350
        %v673 = vmul.f32 %v514, %v542
        %v674 = vmul.f32 %v516, %v556
        %v675 = vmul.f32 %v518, %v570
        %v676 = vmul.f32 %v520, %v584
        %v677 = vsub.f32 %v493, %v586
        %v678 = vsub.f32 %v494, %v588
        %v679 = vsub.f32 %v495, %v590
        %v680 = vsub.f32 %v496, %v592
        %v681 = vsel %vm669, %v677, 0.0
        %v682 = vsel %vm670, %v678, 0.0
        %v683 = vsel %vm671, %v679, 0.0
        %v684 = vsel %vm672, %v680, 0.0
        %v685 = vadd.f32 %v629, %v681
        %v686 = vadd.f32 %v630, %v682
        %v687 = vadd.f32 %v631, %v683
        %v688 = vadd.f32 %v632, %v684
        %v689 = vsel %vm347, %v673, 0.0
        %v690 = vsel %vm348, %v674, 0.0
        %v691 = vsel %vm349, %v675, 0.0
        %v692 = vsel %vm350, %v676, 0.0
        %s693 = scalar_lea.vmem %s302, 24 [#allocation11]
        %v694 = vld [vmem:[%s693] sm:$0xff]
        %v695 = vsel %vm669, %v673, 0.0
        %v696 = vsel %vm670, %v674, 0.0
        %v697 = vsel %vm671, %v675, 0.0
        %v698 = vsel %vm672, %v676, 0.0
        %v699 = vadd.f32 %v695, %v696
        %v700 = vadd.f32 %v699, %v697
        %v701 = vadd.f32 %v700, %v698
        %v702 = vadd.f32 %v694, %v701
        %703 = vst [vmem:[%s693] sm:$0xff] %v702
        %s704 = scalar_lea.vmem %s302, 32 [#allocation11]
        %v705 = vld [vmem:[%s704] sm:$0xff]
        %v706 = vadd.f32 %v689, %v690
        %v707 = vadd.f32 %v706, %v691
        %v708 = vadd.f32 %v707, %v692
        %v709 = vadd.f32 %v705, %v708
        %710 = vst [vmem:[%s704] sm:$0xff] %v709
        %s711 = scalar_lea.vmem %s302, 40 [#allocation11]
        %v712 = vld [vmem:[%s711] sm:$0xff]
        %v713 = vsel %vm669, 1.0, 0.0
        %v714 = vsel %vm670, 1.0, 0.0
        %v715 = vsel %vm671, 1.0, 0.0
        %v716 = vsel %vm672, 1.0, 0.0
        %v717 = vadd.f32 %v713, %v714
        %v718 = vadd.f32 %v717, %v715
        %v719 = vadd.f32 %v718, %v716
        %v720 = vadd.f32 %v712, %v719
        %721 = vst [vmem:[%s711] sm:$0xff] %v720
        %s722 = scalar_lea.vmem %s302, 48 [#allocation11]
        %v723 = vld [vmem:[%s722] sm:$0xff]
        %v724 = vadd.f32 %v685, %v686
        %v725 = vadd.f32 %v724, %v687
        %v726 = vadd.f32 %v725, %v688
        %v727 = vsub.f32 %v723, %v726
        %728 = vst [vmem:[%s722] sm:$0xff] %v727
        %s729 = sand.u32 %s144, 1
        %s730 = scalar_lea.sflag [#allocation4], %s729
        %s731 = sand.u32 %s144, 1
        %s732 = smul.addr %s731, 56
        %s733 = scalar_lea.vmem [#allocation11], %s732
        // Predicated region
        $region57: #{tpu_custom_call.1} parent=35 // pred_check
          %p734 = pneg %p154
        $region58: #{tpu_custom_call.1} parent=35 // pred_check_branch
          %736 = sbr.rel (%p734) target = $region60
        $region59: #{tpu_custom_call.1} parent=35 // pred_region
          %738 = vsyncadd %s730, 0
          %s739 = smul.addr %s30, 7
          %s740 = smul.addr %s739, 8
          %s741 = scalar_lea.hbm %s4, %s740
          %s742 = sshll.u32 %s733, 4
          %s743 = int_to_ptr.vmem [resolvable:$true] %s742
          %s744 = sshll.u32 %s741, 4
          %s745 = int_to_ptr.hbm [resolvable:$true] %s744
          %750 = dma.vmem_to_hbm [thread:$0]  %s743, 896, %s745, %s730, 128, 128, 8
        $region60: #{tpu_custom_call.1} parent=35 // pred_fallthru
          _
      $region36: #{tpu_custom_call.1} parent=5 // pred_fallthru
        _
      %p751 = scmp.le.s32.totalorder 2, %s21
      // Predicated region
      $region61: #{tpu_custom_call.1} parent=5 // pred_check
        %p752 = pneg %p751
      $region62: #{tpu_custom_call.1} parent=5 // pred_check_branch
        %754 = sbr.rel (%p752) target = $region64
      $region63: #{tpu_custom_call.1} parent=5 // pred_region
        %s755 = ssub.s32 %s21, 2
        // Predicated region
        $region65: #{tpu_custom_call.1} parent=63 // pred_check
          %p756 = pneg %p160
        $region66: #{tpu_custom_call.1} parent=63 // pred_check_branch
          %758 = sbr.rel (%p756) target = $region68
        $region67: #{tpu_custom_call.1} parent=63 // pred_region
          %s759 = sand.u32 %s145, 1
          %s760 = scalar_lea.sflag [#allocation4], %s759
          %s761 = sand.u32 %s145, 1
          %s762 = smul.addr %s761, 56
          %s763 = scalar_lea.vmem [#allocation11], %s762
          %765 = dma.done %s760, 896
        $region68: #{tpu_custom_call.1} parent=63 // pred_fallthru
          _
      $region64: #{tpu_custom_call.1} parent=5 // pred_fallthru
        _
    $region6: #{tpu_custom_call.1} parent=1 // loop_footer
      %s25 = sadd.s32 1, %s21
    $region7: #{tpu_custom_call.1} parent=1 // loop_footer_branch
      %20 = sbr.rel target = $region3
    $region8: #{tpu_custom_call.1} parent=1 // loop_exit
      _
    %766 = vsyncpa [#allocation3], 1
    %s767 = scalar_lea.sflag [#allocation3], 1
    %768 = vsyncpa %s767, 1
    %769 = vsyncpa [#allocation8], 1
    %s770 = scalar_lea.sflag [#allocation8], 1
    %771 = vsyncpa %s770, 1
    %772 = vsyncpa [#allocation4], 1
    %s773 = scalar_lea.sflag [#allocation4], 1
    %774 = vsyncpa %s773, 1
    %775 = vsyncpa [#allocation5], 1
    %s776 = scalar_lea.sflag [#allocation5], 1
    %777 = vsyncpa %s776, 1
    %778 = vsyncpa [#allocation6], 1
    %s779 = scalar_lea.sflag [#allocation6], 1
    %780 = vsyncpa %s779, 1

</llo_original>
